<compile_context>
chip_gen: v7x
topology: tpu7x:2x2x1
jax: 0.10.0
libtpu: 0.0.40
codegen_flags: <defaults>
</compile_context>

<pallas_src>
import jax
import jax.numpy as jnp
from jax.experimental import pallas as pl
from jax.experimental.pallas import tpu as pltpu

LANES = 128


def _round_up8(v):
    return ((v + 7) // 8) * 8


def _offsets(x_dim, d_dim, bn):
    """Row offsets of each packed block inside the (rows, 128) param buffer."""
    o_w1 = 0                              # [x_dim, 2d]  fused [g1w | l1w]
    o_w2 = o_w1 + _round_up8(x_dim)       # [d, 2d]      fused [g2w | l2w]
    o_w3 = o_w2 + _round_up8(d_dim)       # [d, 2d]      fused [g3w | l3w]
    o_r1 = o_w3 + _round_up8(d_dim)       # [d, d]       r1w
    o_r2 = o_r1 + _round_up8(d_dim)       # [d, 128]     r2w zero-padded to 128 lanes
    o_b = o_r2 + _round_up8(d_dim)        # 5 bias rows: b1, b2, b3, r1b, r2b
    o_m = o_b + 8                         # [BN, BN]     kron(I_B, ones(N,N)/N)
    rows = o_m + _round_up8(bn)
    return o_w1, o_w2, o_w3, o_r1, o_r2, o_b, o_m, rows


def pack_params(params, x_dim, d_dim, batch, set_size):
    """Concatenate all weights/biases (+ the per-set averaging matrix) into a
    single lane-aligned f32 buffer so the kernel needs one parameter DMA."""
    (g1w, g1b, l1w, g2w, g2b, l2w, g3w, g3b, l3w,
     r1w, r1b, r2w, r2b) = params
    bn = batch * set_size
    assert 2 * d_dim <= LANES and x_dim <= 8 and bn <= LANES
    o_w1, o_w2, o_w3, o_r1, o_r2, o_b, o_m, rows = _offsets(x_dim, d_dim, bn)

    p = jnp.zeros((rows, LANES), jnp.float32)
    p = p.at[o_w1:o_w1 + x_dim, 0:2 * d_dim].set(jnp.concatenate([g1w, l1w], 1))
    p = p.at[o_w2:o_w2 + d_dim, 0:2 * d_dim].set(jnp.concatenate([g2w, l2w], 1))
    p = p.at[o_w3:o_w3 + d_dim, 0:2 * d_dim].set(jnp.concatenate([g3w, l3w], 1))
    p = p.at[o_r1:o_r1 + d_dim, 0:d_dim].set(r1w)
    p = p.at[o_r2:o_r2 + d_dim, 0:r2w.shape[1]].set(r2w)
    p = p.at[o_b + 0, 0:d_dim].set(g1b[0])
    p = p.at[o_b + 1, 0:d_dim].set(g2b[0])
    p = p.at[o_b + 2, 0:d_dim].set(g3b[0])
    p = p.at[o_b + 3, 0:d_dim].set(r1b[0])
    p = p.at[o_b + 4, 0:r2b.shape[1]].set(r2b[0])
    # Block-averaging matrix: reduces over each set of N rows and
    # re-broadcasts the per-set mean back to every row of that set.
    m_avg = jnp.kron(jnp.eye(batch, dtype=jnp.float32),
                     jnp.full((set_size, set_size), 1.0 / set_size, jnp.float32))
    p = p.at[o_m:o_m + bn, 0:bn].set(m_avg)
    return p


def dtanh_forward(x, params):
    B, N, x_dim = x.shape
    d = params[0].shape[1]          # g1w: (x_dim, d)
    out_dim = params[11].shape[1]   # r2w: (d, out_dim)
    bn = B * N
    o_w1, o_w2, o_w3, o_r1, o_r2, o_b, o_m, _ = _offsets(x_dim, d, bn)

    packed = pack_params(params, x_dim, d, B, N)
    x_flat = x.reshape(bn, x_dim).astype(jnp.float32)   # host-side flatten

    def kernel(x_ref, p_ref, o_ref):
        m_avg = p_ref[o_m:o_m + bn, 0:bn]          # (BN, BN)
        biases = p_ref[o_b:o_b + 8, :]             # (8, 128) single aligned load
        b1, b2, b3 = biases[0:1, 0:d], biases[1:2, 0:d], biases[2:3, 0:d]
        r1b, r2b = biases[3:4, 0:d], biases[4:5, :]

        def perm_equi2_mean(z, b):
            # z = h @ [Wg | Wl], shape (BN, 2d): Gamma(h) - Lambda(mean_N(h)).
            gamma = z[:, 0:d] + b
            lam = jnp.dot(m_avg, z[:, d:2 * d],
                          preferred_element_type=jnp.float32)
            return jnp.tanh(gamma - lam)

        # Layer 1: K = x_dim (tiny) -> VPU broadcast mul-adds, no MXU pass.
        w1 = p_ref[o_w1:o_w1 + x_dim, 0:2 * d]     # (x_dim, 2d)
        xv = x_ref[...]                            # (BN, x_dim)
        z1 = xv[:, 0:1] * w1[0:1, :]
        for k in range(1, x_dim):
            z1 = z1 + xv[:, k:k + 1] * w1[k:k + 1, :]
        h = perm_equi2_mean(z1, b1)

        # Layers 2 & 3: one fused MXU matmul each over all B*N rows.
        w2 = p_ref[o_w2:o_w2 + d, 0:2 * d]
        h = perm_equi2_mean(
            jnp.dot(h, w2, preferred_element_type=jnp.float32), b2)
        w3 = p_ref[o_w3:o_w3 + d, 0:2 * d]
        h = perm_equi2_mean(
            jnp.dot(h, w3, preferred_element_type=jnp.float32), b3)

        # Max-pool over the set axis, entirely in vregs: each set is an
        # 8-aligned contiguous sublane slice, reduced with a sublane max.
        pooled = jnp.concatenate(
            [jnp.max(h[b * N:(b + 1) * N, :], axis=0, keepdims=True)
             for b in range(B)], axis=0)           # (B, d)

        # ro head.  TODO(synk): nn.Dropout(p=0.5) treated as identity (eval mode).
        r1w = p_ref[o_r1:o_r1 + d, 0:d]
        y = jnp.tanh(jnp.dot(pooled, r1w,
                             preferred_element_type=jnp.float32) + r1b)
        r2w = p_ref[o_r2:o_r2 + d, :]              # (d, 128), zero-padded
        out = jnp.dot(y, r2w, preferred_element_type=jnp.float32) + r2b
        o_ref[...] = out.astype(o_ref.dtype)       # single lane-dense (B,128) store

    out_padded = pl.pallas_call(
        kernel,
        out_shape=jax.ShapeDtypeStruct((B, LANES), jnp.float32),
        in_specs=[pl.BlockSpec(memory_space=pltpu.MemorySpace.VMEM)] * 2,
        out_specs=pl.BlockSpec(memory_space=pltpu.MemorySpace.VMEM),
    )(x_flat, packed)
    return out_padded[:, :out_dim]


def init_params(key, x_dim, d_dim):
    """Deterministic init mirroring PyTorch nn.Linear shapes.

    Weights are stored as (in_dim, out_dim) so the kernel does h @ W + b
    (equivalent to PyTorch's x @ W.T + b with W of shape (out, in)).
    PermEqui2_mean has Gamma = Linear(in, out) with bias and
    Lambda = Linear(in, out, bias=False).
    """
    keys = jax.random.split(key, 16)

    def lin_w(k, fan_in, fan_out):
        bound = 1.0 / jnp.sqrt(jnp.float32(fan_in))
        return jax.random.uniform(k, (fan_in, fan_out), jnp.float32, -bound, bound)

    def lin_b(k, fan_in, fan_out):
        bound = 1.0 / jnp.sqrt(jnp.float32(fan_in))
        return jax.random.uniform(k, (1, fan_out), jnp.float32, -bound, bound)

    g1w = lin_w(keys[0], x_dim, d_dim)
    g1b = lin_b(keys[1], x_dim, d_dim)
    l1w = lin_w(keys[2], x_dim, d_dim)

    g2w = lin_w(keys[3], d_dim, d_dim)
    g2b = lin_b(keys[4], d_dim, d_dim)
    l2w = lin_w(keys[5], d_dim, d_dim)

    g3w = lin_w(keys[6], d_dim, d_dim)
    g3b = lin_b(keys[7], d_dim, d_dim)
    l3w = lin_w(keys[8], d_dim, d_dim)

    r1w = lin_w(keys[9], d_dim, d_dim)
    r1b = lin_b(keys[10], d_dim, d_dim)
    r2w = lin_w(keys[11], d_dim, 4)
    r2b = lin_b(keys[12], d_dim, 4)

    return (g1w, g1b, l1w, g2w, g2b, l2w, g3w, g3b, l3w, r1w, r1b, r2w, r2b)


def dtanh_reference(x, params):
    """Pure-JAX reference of the PyTorch forward (eval mode)."""
    (g1w, g1b, l1w, g2w, g2b, l2w, g3w, g3b, l3w, r1w, r1b, r2w, r2b) = params

    def pe_mean(h, wg, bg, wl):
        xm = jnp.mean(h, axis=1, keepdims=True)          # (B, 1, in)
        return jnp.tanh(h @ wg + bg - xm @ wl)

    h = pe_mean(x, g1w, g1b, l1w)
    h = pe_mean(h, g2w, g2b, l2w)
    h = pe_mean(h, g3w, g3b, l3w)
    pooled = jnp.max(h, axis=1)                          # (B, d)
    y = jnp.tanh(pooled @ r1w + r1b)
    return y @ r2w + r2b                                 # (B, 4)


if __name__ == "__main__":
    B, N, X_DIM, D_DIM = 2, 8, 2, 32

    key = jax.random.PRNGKey(0)
    k_x, k_p = jax.random.split(key)
    x = jax.random.normal(k_x, (B, N, X_DIM), dtype=jnp.float32)
    params = init_params(k_p, X_DIM, D_DIM)

    out = dtanh_forward(x, params)
    out = jax.block_until_ready(out)

    ref = dtanh_reference(x, params)
    assert out.shape == (B, 4), out.shape
    assert jnp.allclose(out, ref, atol=2e-5, rtol=2e-5), (out, ref)

    print("KERNEL_OK")
</pallas_src>

<mosaic_0001>
module attributes {stable_mosaic.version = 11 : i64} {
  func.func @kernel(%arg0: memref<16x2xf32, #tpu.memory_space<vmem>>, %arg1: memref<160x128xf32, #tpu.memory_space<vmem>>, %arg2: memref<2x128xf32, #tpu.memory_space<vmem>>) attributes {dimension_semantics = [], scalar_prefetch = 0 : i64, scratch_operands = 0 : i64, tpu.core_type = #tpu.core_type<tc>} {
    %c144 = arith.constant 144 : index
    %c0 = arith.constant 0 : index
    %0 = vector.load %arg1[%c144, %c0] : memref<160x128xf32, #tpu.memory_space<vmem>>, vector<16x16xf32>
    %c136 = arith.constant 136 : index
    %c0_0 = arith.constant 0 : index
    %1 = vector.load %arg1[%c136, %c0_0] : memref<160x128xf32, #tpu.memory_space<vmem>>, vector<8x128xf32>
    %2 = vector.extract_strided_slice %1 {offsets = [0, 0], sizes = [1, 32], strides = [1, 1]} : vector<8x128xf32> to vector<1x32xf32>
    %3 = vector.extract_strided_slice %1 {offsets = [1, 0], sizes = [1, 32], strides = [1, 1]} : vector<8x128xf32> to vector<1x32xf32>
    %4 = vector.extract_strided_slice %1 {offsets = [2, 0], sizes = [1, 32], strides = [1, 1]} : vector<8x128xf32> to vector<1x32xf32>
    %5 = vector.extract_strided_slice %1 {offsets = [3, 0], sizes = [1, 32], strides = [1, 1]} : vector<8x128xf32> to vector<1x32xf32>
    %6 = vector.extract_strided_slice %1 {offsets = [4, 0], sizes = [1, 128], strides = [1, 1]} : vector<8x128xf32> to vector<1x128xf32>
    %c0_1 = arith.constant 0 : index
    %c0_2 = arith.constant 0 : index
    %7 = vector.load %arg1[%c0_1, %c0_2] : memref<160x128xf32, #tpu.memory_space<vmem>>, vector<2x64xf32>
    %c0_3 = arith.constant 0 : index
    %c0_4 = arith.constant 0 : index
    %8 = vector.load %arg0[%c0_3, %c0_4] : memref<16x2xf32, #tpu.memory_space<vmem>>, vector<16x2xf32>
    %9 = vector.extract_strided_slice %8 {offsets = [0, 0], sizes = [16, 1], strides = [1, 1]} : vector<16x2xf32> to vector<16x1xf32>
    %10 = vector.extract_strided_slice %7 {offsets = [0, 0], sizes = [1, 64], strides = [1, 1]} : vector<2x64xf32> to vector<1x64xf32>
    %11 = vector.broadcast %9 : vector<16x1xf32> to vector<16x64xf32>
    %12 = vector.broadcast %10 : vector<1x64xf32> to vector<16x64xf32>
    %13 = arith.mulf %11, %12 : vector<16x64xf32>
    %14 = vector.extract_strided_slice %8 {offsets = [0, 1], sizes = [16, 1], strides = [1, 1]} : vector<16x2xf32> to vector<16x1xf32>
    %15 = vector.extract_strided_slice %7 {offsets = [1, 0], sizes = [1, 64], strides = [1, 1]} : vector<2x64xf32> to vector<1x64xf32>
    %16 = vector.broadcast %14 : vector<16x1xf32> to vector<16x64xf32>
    %17 = vector.broadcast %15 : vector<1x64xf32> to vector<16x64xf32>
    %18 = arith.mulf %16, %17 : vector<16x64xf32>
    %19 = arith.addf %13, %18 : vector<16x64xf32>
    %20 = vector.extract_strided_slice %19 {offsets = [0, 0], sizes = [16, 32], strides = [1, 1]} : vector<16x64xf32> to vector<16x32xf32>
    %21 = vector.broadcast %2 : vector<1x32xf32> to vector<16x32xf32>
    %22 = arith.addf %20, %21 : vector<16x32xf32>
    %23 = vector.extract_strided_slice %19 {offsets = [0, 32], sizes = [16, 32], strides = [1, 1]} : vector<16x64xf32> to vector<16x32xf32>
    %cst = arith.constant dense<0.000000e+00> : vector<16x32xf32>
    %24 = tpu.matmul %0, %23, %cst {dimension_numbers = #tpu.dot_dimension_numbers<[1], [0], [0], [1], [0, 0, 1, 1], [], []>} : vector<16x16xf32>, vector<16x32xf32>, vector<16x32xf32> -> vector<16x32xf32>
    %25 = arith.subf %22, %24 : vector<16x32xf32>
    %26 = math.tanh %25 : vector<16x32xf32>
    %c8 = arith.constant 8 : index
    %c0_5 = arith.constant 0 : index
    %27 = vector.load %arg1[%c8, %c0_5] : memref<160x128xf32, #tpu.memory_space<vmem>>, vector<32x64xf32>
    %cst_6 = arith.constant dense<0.000000e+00> : vector<16x64xf32>
    %28 = tpu.matmul %26, %27, %cst_6 {dimension_numbers = #tpu.dot_dimension_numbers<[1], [0], [0], [1], [0, 0, 1, 1], [], []>} : vector<16x32xf32>, vector<32x64xf32>, vector<16x64xf32> -> vector<16x64xf32>
    %29 = vector.extract_strided_slice %28 {offsets = [0, 0], sizes = [16, 32], strides = [1, 1]} : vector<16x64xf32> to vector<16x32xf32>
    %30 = vector.broadcast %3 : vector<1x32xf32> to vector<16x32xf32>
    %31 = arith.addf %29, %30 : vector<16x32xf32>
    %32 = vector.extract_strided_slice %28 {offsets = [0, 32], sizes = [16, 32], strides = [1, 1]} : vector<16x64xf32> to vector<16x32xf32>
    %cst_7 = arith.constant dense<0.000000e+00> : vector<16x32xf32>
    %33 = tpu.matmul %0, %32, %cst_7 {dimension_numbers = #tpu.dot_dimension_numbers<[1], [0], [0], [1], [0, 0, 1, 1], [], []>} : vector<16x16xf32>, vector<16x32xf32>, vector<16x32xf32> -> vector<16x32xf32>
    %34 = arith.subf %31, %33 : vector<16x32xf32>
    %35 = math.tanh %34 : vector<16x32xf32>
    %c40 = arith.constant 40 : index
    %c0_8 = arith.constant 0 : index
    %36 = vector.load %arg1[%c40, %c0_8] : memref<160x128xf32, #tpu.memory_space<vmem>>, vector<32x64xf32>
    %cst_9 = arith.constant dense<0.000000e+00> : vector<16x64xf32>
    %37 = tpu.matmul %35, %36, %cst_9 {dimension_numbers = #tpu.dot_dimension_numbers<[1], [0], [0], [1], [0, 0, 1, 1], [], []>} : vector<16x32xf32>, vector<32x64xf32>, vector<16x64xf32> -> vector<16x64xf32>
    %38 = vector.extract_strided_slice %37 {offsets = [0, 0], sizes = [16, 32], strides = [1, 1]} : vector<16x64xf32> to vector<16x32xf32>
    %39 = vector.broadcast %4 : vector<1x32xf32> to vector<16x32xf32>
    %40 = arith.addf %38, %39 : vector<16x32xf32>
    %41 = vector.extract_strided_slice %37 {offsets = [0, 32], sizes = [16, 32], strides = [1, 1]} : vector<16x64xf32> to vector<16x32xf32>
    %cst_10 = arith.constant dense<0.000000e+00> : vector<16x32xf32>
    %42 = tpu.matmul %0, %41, %cst_10 {dimension_numbers = #tpu.dot_dimension_numbers<[1], [0], [0], [1], [0, 0, 1, 1], [], []>} : vector<16x16xf32>, vector<16x32xf32>, vector<16x32xf32> -> vector<16x32xf32>
    %43 = arith.subf %40, %42 : vector<16x32xf32>
    %44 = math.tanh %43 : vector<16x32xf32>
    %45 = vector.extract_strided_slice %44 {offsets = [0, 0], sizes = [8, 32], strides = [1, 1]} : vector<16x32xf32> to vector<8x32xf32>
    %cst_11 = arith.constant dense<0xFF800000> : vector<32xf32>
    %46 = vector.multi_reduction <maximumf>, %45, %cst_11 [0] : vector<8x32xf32> to vector<32xf32>
    %47 = vector.shape_cast %46 : vector<32xf32> to vector<1x32xf32>
    %48 = vector.extract_strided_slice %44 {offsets = [8, 0], sizes = [8, 32], strides = [1, 1]} : vector<16x32xf32> to vector<8x32xf32>
    %cst_12 = arith.constant dense<0xFF800000> : vector<32xf32>
    %49 = vector.multi_reduction <maximumf>, %48, %cst_12 [0] : vector<8x32xf32> to vector<32xf32>
    %50 = vector.shape_cast %49 : vector<32xf32> to vector<1x32xf32>
    %51 = tpu.concatenate %47, %50 in 0 : vector<1x32xf32>, vector<1x32xf32> -> vector<2x32xf32>
    %c72 = arith.constant 72 : index
    %c0_13 = arith.constant 0 : index
    %52 = vector.load %arg1[%c72, %c0_13] : memref<160x128xf32, #tpu.memory_space<vmem>>, vector<32x32xf32>
    %cst_14 = arith.constant dense<0.000000e+00> : vector<2x32xf32>
    %53 = tpu.matmul %51, %52, %cst_14 {dimension_numbers = #tpu.dot_dimension_numbers<[1], [0], [0], [1], [0, 0, 1, 1], [], []>} : vector<2x32xf32>, vector<32x32xf32>, vector<2x32xf32> -> vector<2x32xf32>
    %54 = vector.broadcast %5 : vector<1x32xf32> to vector<2x32xf32>
    %55 = arith.addf %53, %54 : vector<2x32xf32>
    %56 = math.tanh %55 : vector<2x32xf32>
    %c104 = arith.constant 104 : index
    %c0_15 = arith.constant 0 : index
    %57 = vector.load %arg1[%c104, %c0_15] : memref<160x128xf32, #tpu.memory_space<vmem>>, vector<32x128xf32>
    %cst_16 = arith.constant dense<0.000000e+00> : vector<2x128xf32>
    %58 = tpu.matmul %56, %57, %cst_16 {dimension_numbers = #tpu.dot_dimension_numbers<[1], [0], [0], [1], [0, 0, 1, 1], [], []>} : vector<2x32xf32>, vector<32x128xf32>, vector<2x128xf32> -> vector<2x128xf32>
    %59 = vector.broadcast %6 : vector<1x128xf32> to vector<2x128xf32>
    %60 = arith.addf %58, %59 : vector<2x128xf32>
    %c0_17 = arith.constant 0 : index
    %c0_18 = arith.constant 0 : index
    %61 = vector.load %arg2[%c0_17, %c0_18] : memref<2x128xf32, #tpu.memory_space<vmem>>, vector<2x128xf32>
    tpu.vector_store %arg2[%c0_17, %c0_18], %60 {strides = array<i32>} : memref<2x128xf32, #tpu.memory_space<vmem>>, vector<2x128xf32>,
    return
  }
}

</mosaic_0001>

<llo_original>
// kernel: tpu_custom_call.1
$region0: #{tpu_custom_call.1}
  #allocation0 [shape = 'u32[]', space=smem, size = 0x4, offset = 0x4, fixed_abs, tag = 'smem constant byte address 0x4 - core index']
  #allocation1 [shape = 'u32[144,128]{1,0:T(1,128)}', space=vmem, size = 0x12000, scoped, tag = 'internal scratch']
  %s0 = inlined_call_operand.vmem [shape: f32[16,2], index: 0, kind: input, shape index: {}]
  %s1 = inlined_call_operand.hbm [shape: f32[160,128], index: 1, kind: input, shape index: {}]
  %s2 = inlined_call_operand.hbm [shape: f32[2,128], index: 2, kind: output, shape index: {}]
  %s3 = sld [smem:[#allocation0]]
  $region22: #{tpu_custom_call.1} parent=0
    _
  %s5 = ssub.s32 1, %s3
  %s6 = scalar_select 0, %s5, %s3
  $region1: #{tpu_custom_call.1} parent=0
    #allocation2 [shape = 'u8[81920]{0}', space=vmem, size = 0x14000, scoped, tag = 'input window, operand 1, single buffered']
    #allocation3 [shape = 's32[1]{0}', space=sflag, size = 0x4, scoped, tag = 'scoped memory for tpu_custom_call.1']
    #allocation4 [shape = 's32[1]{0}', space=sflag, size = 0x4, scoped, tag = 'scoped memory for tpu_custom_call.1']
    #allocation5 [shape = 'u8[1024]{0}', space=vmem, size = 0x400, scoped, tag = 'output window, operand 0, single buffered']
    %7 = vsyncpa [#allocation3], 0
    %8 = vsyncpa [#allocation4], 0
    // Predicated region
    $region2: #{tpu_custom_call.1} parent=1 // pred_check
      _
    $region3: #{tpu_custom_call.1} parent=1 // pred_check_branch
      %10 = sbr.rel (0) target = $region5
    $region4: #{tpu_custom_call.1} parent=1 // pred_region
      _
    $region5: #{tpu_custom_call.1} parent=1 // pred_fallthru
      _
    // Predicated region
    $region6: #{tpu_custom_call.1} parent=1 // pred_check
      _
    $region7: #{tpu_custom_call.1} parent=1 // pred_check_branch
      %12 = sbr.rel (0) target = $region9
    $region8: #{tpu_custom_call.1} parent=1 // pred_region
      %s14 = ssub.s32 2560, 2560
      %15 = vsyncadd [#allocation3], %s14
      %s16 = sshll.u32 [#allocation2], 4
      %s17 = int_to_ptr.vmem [resolvable:$true] %s16
      %22 = dma.hbm_to_vmem [thread:$0]  %s1, 2560, %s17, [#allocation3], 128, 128, 8
    $region9: #{tpu_custom_call.1} parent=1 // pred_fallthru
      _
    // Predicated region
    $region10: #{tpu_custom_call.1} parent=1 // pred_check
      _
    $region11: #{tpu_custom_call.1} parent=1 // pred_check_branch
      %24 = sbr.rel (0) target = $region13
    $region12: #{tpu_custom_call.1} parent=1 // pred_region
      %25 = dma.done [#allocation3], 2560
    $region13: #{tpu_custom_call.1} parent=1 // pred_fallthru
      _
    %v26 = vld [vmem:[#allocation2 + $0x90] sm:$0xff]
    %v27 = vld [vmem:[#allocation2 + $0x98] sm:$0xff]
    %v28 = vld [vmem:[#allocation2 + $0x88] sm:$0xff]
    %v29 = vld [vmem:[#allocation2] sm:$0x3]
    %v30 = vld [vmem:[%s0] sm:$0xff]
    %v31 = vld [vmem:[%s0 + $0x8] sm:$0xff]
    %33 = vset.pattern.permute.xlu0 0
    %34 = vperm.xlu0 %33, %v30
    %v35 = vpop.permute.xlu0 %34
    %38 = vset.pattern.permute.xlu0 0
    %39 = vperm.xlu0 %38, %v31
    %v40 = vpop.permute.xlu0 %39
    %v42 = vlaneseq
    %v43 = vshrl.u32 %v42, 7
    %v44 = vsub.s32 0, %v43
    %v45 = vrot.slane %v29, %v44
    %v46 = vmul.f32 %v35, %v45
    %v47 = vmul.f32 %v40, %v45
    %48 = vset.pattern.permute.xlu0 1
    %49 = vperm.xlu0 %48, %v30
    %v50 = vpop.permute.xlu0 %49
    %52 = vset.pattern.permute.xlu0 1
    %53 = vperm.xlu0 %52, %v31
    %v54 = vpop.permute.xlu0 %53
    %v56 = vlaneseq
    %v57 = vshrl.u32 %v56, 7
    %v58 = vsub.s32 1, %v57
    %v59 = vrot.slane %v29, %v58
    %v60 = vmul.f32 %v50, %v59
    %v61 = vmul.f32 %v54, %v59
    %v62 = vadd.f32 %v46, %v60
    %v63 = vadd.f32 %v47, %v61
    %v64 = vlaneseq
    %v65 = vshrl.u32 %v64, 7
    %v66 = vsub.s32 0, %v65
    %v67 = vrot.slane %v28, %v66
    %v68 = vadd.f32 %v62, %v67
    %v69 = vadd.f32 %v63, %v67
    %72 = vrot.lane.b32.xlu0 %v62, 96
    %v73 = vpop.permute.xlu0 %72
    %74 = vrot.lane.b32.xlu0 %v63, 96
    %v75 = vpop.permute.xlu0 %74
    %vm78 = vcmask 130048
    %v80 = vsel %vm78, %v26, 0
    %v83 = vsel %vm78, %v27, 0
    %85 = vmatprep.subr.mxu0 0.0
    %86 = vmatpush1.msra.mxu0 %v73
    %87 = vmatprep.subr.mxu0 0.0
    %88 = vmatpush1.msra.mxu0 %v75
    %89 = vmatprep.subr.mxu0 0.0
    %90 = vmatpush1.msra.mxu0 0.0
    %91 = vmatprep.subr.mxu0 0.0
    %92 = vmatpush1.msra.mxu0 0.0
    %93 = vmatprep.subr.mxu0 0.0
    %94 = vmatpush1.msra.mxu0 0.0
    %95 = vmatprep.subr.mxu0 0.0
    %96 = vmatpush1.msra.mxu0 0.0
    %97 = vmatprep.subr.mxu0 0.0
    %98 = vmatpush1.msra.mxu0 0.0
    %99 = vmatprep.subr.mxu0 0.0
    %100 = vmatpush1.msra.mxu0 0.0
    %101 = vmatprep.subr.mxu0 0.0
    %102 = vmatpush1.msra.mxu0 0.0
    %103 = vmatprep.subr.mxu0 0.0
    %104 = vmatpush1.msra.mxu0 0.0
    %105 = vmatprep.subr.mxu0 0.0
    %106 = vmatpush1.msra.mxu0 0.0
    %107 = vmatprep.subr.mxu0 0.0
    %108 = vmatpush1.msra.mxu0 0.0
    %109 = vmatprep.subr.mxu0 0.0
    %110 = vmatpush1.msra.mxu0 0.0
    %111 = vmatprep.subr.mxu0 0.0
    %112 = vmatpush1.msra.mxu0 0.0
    %113 = vmatprep.subr.mxu0 0.0
    %114 = vmatpush1.msra.mxu0 0.0
    %115 = vmatprep.subr.mxu0 0.0
    %116 = vmatpush1.msra.mxu0 0.0
    %117 = vmatprep.subr.mxu0 0.0
    %118 = vmatpush1.msra.mxu0 0.0
    %119 = vmatprep.subr.mxu0 0.0
    %120 = vmatpush1.msra.mxu0 0.0
    %121 = vmatprep.subr.mxu0 0.0
    %122 = vmatpush1.msra.mxu0 0.0
    %123 = vmatprep.subr.mxu0 0.0
    %124 = vmatpush1.msra.mxu0 0.0
    %125 = vmatprep.subr.mxu0 0.0
    %126 = vmatpush1.msra.mxu0 0.0
    %127 = vmatprep.subr.mxu0 0.0
    %128 = vmatpush1.msra.mxu0 0.0
    %129 = vmatprep.subr.mxu0 0.0
    %130 = vmatpush1.msra.mxu0 0.0
    %131 = vmatprep.subr.mxu0 0.0
    %132 = vmatpush1.msra.mxu0 0.0
    %133 = vmatprep.subr.mxu0 0.0
    %134 = vmatpush1.msra.mxu0 0.0
    %135 = vmatprep.subr.mxu0 0.0
    %136 = vmatpush1.msra.mxu0 0.0
    %137 = vmatprep.subr.mxu0 0.0
    %138 = vmatpush1.msra.mxu0 0.0
    %139 = vmatprep.subr.mxu0 0.0
    %140 = vmatpush1.msra.mxu0 0.0
    %141 = vmatprep.subr.mxu0 0.0
    %142 = vmatpush1.msra.mxu0 0.0
    %143 = vmatprep.subr.mxu0 0.0
    %144 = vmatpush1.msra.mxu0 0.0
    %145 = vmatprep.subr.mxu0 0.0
    %146 = vmatpush1.msra.mxu0 0.0
    %147 = vmatprep.subr.mxu0 0.0
    %148 = vmatpush1.msra.mxu0 0.0
    %149 = vmatprep.mubr.f32.mxu0 0.0
    %150 = vmatmul.mubr.f32.gmra.mrb[0].mxu0 %v80
    %v151 = vpop.f32.mrb[0].mxu0
    %v152 = vadd.f32 0.0, %v151
    %v153 = vpop.f32.mrb[0].mxu0
    %154 = vmatprep.mubr.f32.mxu0 0.0
    %155 = vmatmul.mubr.f32.gmra.mrb[0].mxu0 %v83
    %v156 = vpop.f32.mrb[0].mxu0
    %v157 = vadd.f32 0.0, %v156
    %v158 = vpop.f32.mrb[0].mxu0
    %159 = vdwg.mxu0
    %v160 = vsub.f32 %v68, %v152
    %v161 = vsub.f32 %v69, %v157
    %v162 = vtanh.pop %v160
    %v163 = vtanh.pop %v161
    %v164 = vld [vmem:[#allocation2 + $0x8] sm:$0xff]
    %v165 = vld [vmem:[#allocation2 + $0x10] sm:$0xff]
    %v166 = vld [vmem:[#allocation2 + $0x18] sm:$0xff]
    %v167 = vld [vmem:[#allocation2 + $0x20] sm:$0xff]
    %vm168 = vcmask 261120
    %v170 = vsel %vm168, %v162, 0
    %v173 = vsel %vm168, %v163, 0
    %175 = vmatprep.subr.mxu0 0.0
    %176 = vmatpush1.msra.mxu0 %v164
    %177 = vmatprep.subr.mxu0 0.0
    %178 = vmatpush1.msra.mxu0 %v165
    %179 = vmatprep.subr.mxu0 0.0
    %180 = vmatpush1.msra.mxu0 %v166
    %181 = vmatprep.subr.mxu0 0.0
    %182 = vmatpush1.msra.mxu0 %v167
    %183 = vmatprep.subr.mxu0 0.0
    %184 = vmatpush1.msra.mxu0 0.0
    %185 = vmatprep.subr.mxu0 0.0
    %186 = vmatpush1.msra.mxu0 0.0
    %187 = vmatprep.subr.mxu0 0.0
    %188 = vmatpush1.msra.mxu0 0.0
    %189 = vmatprep.subr.mxu0 0.0
    %190 = vmatpush1.msra.mxu0 0.0
    %191 = vmatprep.subr.mxu0 0.0
    %192 = vmatpush1.msra.mxu0 0.0
    %193 = vmatprep.subr.mxu0 0.0
    %194 = vmatpush1.msra.mxu0 0.0
    %195 = vmatprep.subr.mxu0 0.0
    %196 = vmatpush1.msra.mxu0 0.0
    %197 = vmatprep.subr.mxu0 0.0
    %198 = vmatpush1.msra.mxu0 0.0
    %199 = vmatprep.subr.mxu0 0.0
    %200 = vmatpush1.msra.mxu0 0.0
    %201 = vmatprep.subr.mxu0 0.0
    %202 = vmatpush1.msra.mxu0 0.0
    %203 = vmatprep.subr.mxu0 0.0
    %204 = vmatpush1.msra.mxu0 0.0
    %205 = vmatprep.subr.mxu0 0.0
    %206 = vmatpush1.msra.mxu0 0.0
    %207 = vmatprep.subr.mxu0 0.0
    %208 = vmatpush1.msra.mxu0 0.0
    %209 = vmatprep.subr.mxu0 0.0
    %210 = vmatpush1.msra.mxu0 0.0
    %211 = vmatprep.subr.mxu0 0.0
    %212 = vmatpush1.msra.mxu0 0.0
    %213 = vmatprep.subr.mxu0 0.0
    %214 = vmatpush1.msra.mxu0 0.0
    %215 = vmatprep.subr.mxu0 0.0
    %216 = vmatpush1.msra.mxu0 0.0
    %217 = vmatprep.subr.mxu0 0.0
    %218 = vmatpush1.msra.mxu0 0.0
    %219 = vmatprep.subr.mxu0 0.0
    %220 = vmatpush1.msra.mxu0 0.0
    %221 = vmatprep.subr.mxu0 0.0
    %222 = vmatpush1.msra.mxu0 0.0
    %223 = vmatprep.subr.mxu0 0.0
    %224 = vmatpush1.msra.mxu0 0.0
    %225 = vmatprep.subr.mxu0 0.0
    %226 = vmatpush1.msra.mxu0 0.0
    %227 = vmatprep.subr.mxu0 0.0
    %228 = vmatpush1.msra.mxu0 0.0
    %229 = vmatprep.subr.mxu0 0.0
    %230 = vmatpush1.msra.mxu0 0.0
    %231 = vmatprep.subr.mxu0 0.0
    %232 = vmatpush1.msra.mxu0 0.0
    %233 = vmatprep.subr.mxu0 0.0
    %234 = vmatpush1.msra.mxu0 0.0
    %235 = vmatprep.subr.mxu0 0.0
    %236 = vmatpush1.msra.mxu0 0.0
    %237 = vmatprep.subr.mxu0 0.0
    %238 = vmatpush1.msra.mxu0 0.0
    %239 = vmatprep.mubr.f32.mxu0 0.0
    %240 = vmatmul.mubr.f32.gmra.mrb[0].mxu0 %v170
    %v241 = vpop.f32.mrb[0].mxu0
    %v242 = vadd.f32 0.0, %v241
    %v243 = vpop.f32.mrb[0].mxu0
    %244 = vmatprep.mubr.f32.mxu0 0.0
    %245 = vmatmul.mubr.f32.gmra.mrb[0].mxu0 %v173
    %v246 = vpop.f32.mrb[0].mxu0
    %v247 = vadd.f32 0.0, %v246
    %v248 = vpop.f32.mrb[0].mxu0
    %249 = vdwg.mxu0
    %v250 = vlaneseq
    %v251 = vshrl.u32 %v250, 7
    %v252 = vsub.s32 1, %v251
    %v253 = vrot.slane %v28, %v252
    %v254 = vadd.f32 %v242, %v253
    %v255 = vadd.f32 %v247, %v253
    %258 = vrot.lane.b32.xlu0 %v242, 96
    %v259 = vpop.permute.xlu0 %258
    %260 = vrot.lane.b32.xlu0 %v247, 96
    %v261 = vpop.permute.xlu0 %260
    %264 = vmatprep.subr.mxu0 0.0
    %265 = vmatpush1.msra.mxu0 %v259
    %266 = vmatprep.subr.mxu0 0.0
    %267 = vmatpush1.msra.mxu0 %v261
    %268 = vmatprep.subr.mxu0 0.0
    %269 = vmatpush1.msra.mxu0 0.0
    %270 = vmatprep.subr.mxu0 0.0
    %271 = vmatpush1.msra.mxu0 0.0
    %272 = vmatprep.subr.mxu0 0.0
    %273 = vmatpush1.msra.mxu0 0.0
    %274 = vmatprep.subr.mxu0 0.0
    %275 = vmatpush1.msra.mxu0 0.0
    %276 = vmatprep.subr.mxu0 0.0
    %277 = vmatpush1.msra.mxu0 0.0
    %278 = vmatprep.subr.mxu0 0.0
    %279 = vmatpush1.msra.mxu0 0.0
    %280 = vmatprep.subr.mxu0 0.0
    %281 = vmatpush1.msra.mxu0 0.0
    %282 = vmatprep.subr.mxu0 0.0
    %283 = vmatpush1.msra.mxu0 0.0
    %284 = vmatprep.subr.mxu0 0.0
    %285 = vmatpush1.msra.mxu0 0.0
    %286 = vmatprep.subr.mxu0 0.0
    %287 = vmatpush1.msra.mxu0 0.0
    %288 = vmatprep.subr.mxu0 0.0
    %289 = vmatpush1.msra.mxu0 0.0
    %290 = vmatprep.subr.mxu0 0.0
    %291 = vmatpush1.msra.mxu0 0.0
    %292 = vmatprep.subr.mxu0 0.0
    %293 = vmatpush1.msra.mxu0 0.0
    %294 = vmatprep.subr.mxu0 0.0
    %295 = vmatpush1.msra.mxu0 0.0
    %296 = vmatprep.subr.mxu0 0.0
    %297 = vmatpush1.msra.mxu0 0.0
    %298 = vmatprep.subr.mxu0 0.0
    %299 = vmatpush1.msra.mxu0 0.0
    %300 = vmatprep.subr.mxu0 0.0
    %301 = vmatpush1.msra.mxu0 0.0
    %302 = vmatprep.subr.mxu0 0.0
    %303 = vmatpush1.msra.mxu0 0.0
    %304 = vmatprep.subr.mxu0 0.0
    %305 = vmatpush1.msra.mxu0 0.0
    %306 = vmatprep.subr.mxu0 0.0
    %307 = vmatpush1.msra.mxu0 0.0
    %308 = vmatprep.subr.mxu0 0.0
    %309 = vmatpush1.msra.mxu0 0.0
    %310 = vmatprep.subr.mxu0 0.0
    %311 = vmatpush1.msra.mxu0 0.0
    %312 = vmatprep.subr.mxu0 0.0
    %313 = vmatpush1.msra.mxu0 0.0
    %314 = vmatprep.subr.mxu0 0.0
    %315 = vmatpush1.msra.mxu0 0.0
    %316 = vmatprep.subr.mxu0 0.0
    %317 = vmatpush1.msra.mxu0 0.0
    %318 = vmatprep.subr.mxu0 0.0
    %319 = vmatpush1.msra.mxu0 0.0
    %320 = vmatprep.subr.mxu0 0.0
    %321 = vmatpush1.msra.mxu0 0.0
    %322 = vmatprep.subr.mxu0 0.0
    %323 = vmatpush1.msra.mxu0 0.0
    %324 = vmatprep.subr.mxu0 0.0
    %325 = vmatpush1.msra.mxu0 0.0
    %326 = vmatprep.subr.mxu0 0.0
    %327 = vmatpush1.msra.mxu0 0.0
    %328 = vmatprep.mubr.f32.mxu0 0.0
    %329 = vmatmul.mubr.f32.gmra.mrb[0].mxu0 %v80
    %v330 = vpop.f32.mrb[0].mxu0
    %v331 = vadd.f32 0.0, %v330
    %v332 = vpop.f32.mrb[0].mxu0
    %333 = vmatprep.mubr.f32.mxu0 0.0
    %334 = vmatmul.mubr.f32.gmra.mrb[0].mxu0 %v83
    %v335 = vpop.f32.mrb[0].mxu0
    %v336 = vadd.f32 0.0, %v335
    %v337 = vpop.f32.mrb[0].mxu0
    %338 = vdwg.mxu0
    %v339 = vsub.f32 %v254, %v331
    %v340 = vsub.f32 %v255, %v336
    %v341 = vtanh.pop %v339
    %v342 = vtanh.pop %v340
    %v343 = vld [vmem:[#allocation2 + $0x28] sm:$0xff]
    %v344 = vld [vmem:[#allocation2 + $0x30] sm:$0xff]
    %v345 = vld [vmem:[#allocation2 + $0x38] sm:$0xff]
    %v346 = vld [vmem:[#allocation2 + $0x40] sm:$0xff]
    %v348 = vsel %vm168, %v341, 0
    %v351 = vsel %vm168, %v342, 0
    %353 = vmatprep.subr.mxu0 0.0
    %354 = vmatpush1.msra.mxu0 %v343
    %355 = vmatprep.subr.mxu0 0.0
    %356 = vmatpush1.msra.mxu0 %v344
    %357 = vmatprep.subr.mxu0 0.0
    %358 = vmatpush1.msra.mxu0 %v345
    %359 = vmatprep.subr.mxu0 0.0
    %360 = vmatpush1.msra.mxu0 %v346
    %361 = vmatprep.subr.mxu0 0.0
    %362 = vmatpush1.msra.mxu0 0.0
    %363 = vmatprep.subr.mxu0 0.0
    %364 = vmatpush1.msra.mxu0 0.0
    %365 = vmatprep.subr.mxu0 0.0
    %366 = vmatpush1.msra.mxu0 0.0
    %367 = vmatprep.subr.mxu0 0.0
    %368 = vmatpush1.msra.mxu0 0.0
    %369 = vmatprep.subr.mxu0 0.0
    %370 = vmatpush1.msra.mxu0 0.0
    %371 = vmatprep.subr.mxu0 0.0
    %372 = vmatpush1.msra.mxu0 0.0
    %373 = vmatprep.subr.mxu0 0.0
    %374 = vmatpush1.msra.mxu0 0.0
    %375 = vmatprep.subr.mxu0 0.0
    %376 = vmatpush1.msra.mxu0 0.0
    %377 = vmatprep.subr.mxu0 0.0
    %378 = vmatpush1.msra.mxu0 0.0
    %379 = vmatprep.subr.mxu0 0.0
    %380 = vmatpush1.msra.mxu0 0.0
    %381 = vmatprep.subr.mxu0 0.0
    %382 = vmatpush1.msra.mxu0 0.0
    %383 = vmatprep.subr.mxu0 0.0
    %384 = vmatpush1.msra.mxu0 0.0
    %385 = vmatprep.subr.mxu0 0.0
    %386 = vmatpush1.msra.mxu0 0.0
    %387 = vmatprep.subr.mxu0 0.0
    %388 = vmatpush1.msra.mxu0 0.0
    %389 = vmatprep.subr.mxu0 0.0
    %390 = vmatpush1.msra.mxu0 0.0
    %391 = vmatprep.subr.mxu0 0.0
    %392 = vmatpush1.msra.mxu0 0.0
    %393 = vmatprep.subr.mxu0 0.0
    %394 = vmatpush1.msra.mxu0 0.0
    %395 = vmatprep.subr.mxu0 0.0
    %396 = vmatpush1.msra.mxu0 0.0
    %397 = vmatprep.subr.mxu0 0.0
    %398 = vmatpush1.msra.mxu0 0.0
    %399 = vmatprep.subr.mxu0 0.0
    %400 = vmatpush1.msra.mxu0 0.0
    %401 = vmatprep.subr.mxu0 0.0
    %402 = vmatpush1.msra.mxu0 0.0
    %403 = vmatprep.subr.mxu0 0.0
    %404 = vmatpush1.msra.mxu0 0.0
    %405 = vmatprep.subr.mxu0 0.0
    %406 = vmatpush1.msra.mxu0 0.0
    %407 = vmatprep.subr.mxu0 0.0
    %408 = vmatpush1.msra.mxu0 0.0
    %409 = vmatprep.subr.mxu0 0.0
    %410 = vmatpush1.msra.mxu0 0.0
    %411 = vmatprep.subr.mxu0 0.0
    %412 = vmatpush1.msra.mxu0 0.0
    %413 = vmatprep.subr.mxu0 0.0
    %414 = vmatpush1.msra.mxu0 0.0
    %415 = vmatprep.subr.mxu0 0.0
    %416 = vmatpush1.msra.mxu0 0.0
    %417 = vmatprep.mubr.f32.mxu0 0.0
    %418 = vmatmul.mubr.f32.gmra.mrb[0].mxu0 %v348
    %v419 = vpop.f32.mrb[0].mxu0
    %v420 = vadd.f32 0.0, %v419
    %v421 = vpop.f32.mrb[0].mxu0
    %422 = vmatprep.mubr.f32.mxu0 0.0
    %423 = vmatmul.mubr.f32.gmra.mrb[0].mxu0 %v351
    %v424 = vpop.f32.mrb[0].mxu0
    %v425 = vadd.f32 0.0, %v424
    %v426 = vpop.f32.mrb[0].mxu0
    %427 = vdwg.mxu0
    %v428 = vlaneseq
    %v429 = vshrl.u32 %v428, 7
    %v430 = vsub.s32 2, %v429
    %v431 = vrot.slane %v28, %v430
    %v432 = vadd.f32 %v420, %v431
    %v433 = vadd.f32 %v425, %v431
    %436 = vrot.lane.b32.xlu0 %v420, 96
    %v437 = vpop.permute.xlu0 %436
    %438 = vrot.lane.b32.xlu0 %v425, 96
    %v439 = vpop.permute.xlu0 %438
    %442 = vmatprep.subr.mxu0 0.0
    %443 = vmatpush1.msra.mxu0 %v437
    %444 = vmatprep.subr.mxu0 0.0
    %445 = vmatpush1.msra.mxu0 %v439
    %446 = vmatprep.subr.mxu0 0.0
    %447 = vmatpush1.msra.mxu0 0.0
    %448 = vmatprep.subr.mxu0 0.0
    %449 = vmatpush1.msra.mxu0 0.0
    %450 = vmatprep.subr.mxu0 0.0
    %451 = vmatpush1.msra.mxu0 0.0
    %452 = vmatprep.subr.mxu0 0.0
    %453 = vmatpush1.msra.mxu0 0.0
    %454 = vmatprep.subr.mxu0 0.0
    %455 = vmatpush1.msra.mxu0 0.0
    %456 = vmatprep.subr.mxu0 0.0
    %457 = vmatpush1.msra.mxu0 0.0
    %458 = vmatprep.subr.mxu0 0.0
    %459 = vmatpush1.msra.mxu0 0.0
    %460 = vmatprep.subr.mxu0 0.0
    %461 = vmatpush1.msra.mxu0 0.0
    %462 = vmatprep.subr.mxu0 0.0
    %463 = vmatpush1.msra.mxu0 0.0
    %464 = vmatprep.subr.mxu0 0.0
    %465 = vmatpush1.msra.mxu0 0.0
    %466 = vmatprep.subr.mxu0 0.0
    %467 = vmatpush1.msra.mxu0 0.0
    %468 = vmatprep.subr.mxu0 0.0
    %469 = vmatpush1.msra.mxu0 0.0
    %470 = vmatprep.subr.mxu0 0.0
    %471 = vmatpush1.msra.mxu0 0.0
    %472 = vmatprep.subr.mxu0 0.0
    %473 = vmatpush1.msra.mxu0 0.0
    %474 = vmatprep.subr.mxu0 0.0
    %475 = vmatpush1.msra.mxu0 0.0
    %476 = vmatprep.subr.mxu0 0.0
    %477 = vmatpush1.msra.mxu0 0.0
    %478 = vmatprep.subr.mxu0 0.0
    %479 = vmatpush1.msra.mxu0 0.0
    %480 = vmatprep.subr.mxu0 0.0
    %481 = vmatpush1.msra.mxu0 0.0
    %482 = vmatprep.subr.mxu0 0.0
    %483 = vmatpush1.msra.mxu0 0.0
    %484 = vmatprep.subr.mxu0 0.0
    %485 = vmatpush1.msra.mxu0 0.0
    %486 = vmatprep.subr.mxu0 0.0
    %487 = vmatpush1.msra.mxu0 0.0
    %488 = vmatprep.subr.mxu0 0.0
    %489 = vmatpush1.msra.mxu0 0.0
    %490 = vmatprep.subr.mxu0 0.0
    %491 = vmatpush1.msra.mxu0 0.0
    %492 = vmatprep.subr.mxu0 0.0
    %493 = vmatpush1.msra.mxu0 0.0
    %494 = vmatprep.subr.mxu0 0.0
    %495 = vmatpush1.msra.mxu0 0.0
    %496 = vmatprep.subr.mxu0 0.0
    %497 = vmatpush1.msra.mxu0 0.0
    %498 = vmatprep.subr.mxu0 0.0
    %499 = vmatpush1.msra.mxu0 0.0
    %500 = vmatprep.subr.mxu0 0.0
    %501 = vmatpush1.msra.mxu0 0.0
    %502 = vmatprep.subr.mxu0 0.0
    %503 = vmatpush1.msra.mxu0 0.0
    %504 = vmatprep.subr.mxu0 0.0
    %505 = vmatpush1.msra.mxu0 0.0
    %506 = vmatprep.mubr.f32.mxu0 0.0
    %507 = vmatmul.mubr.f32.gmra.mrb[0].mxu0 %v80
    %v508 = vpop.f32.mrb[0].mxu0
    %v509 = vadd.f32 0.0, %v508
    %v510 = vpop.f32.mrb[0].mxu0
    %511 = vmatprep.mubr.f32.mxu0 0.0
    %512 = vmatmul.mubr.f32.gmra.mrb[0].mxu0 %v83
    %v513 = vpop.f32.mrb[0].mxu0
    %v514 = vadd.f32 0.0, %v513
    %v515 = vpop.f32.mrb[0].mxu0
    %516 = vdwg.mxu0
    %v517 = vsub.f32 %v432, %v509
    %v518 = vsub.f32 %v433, %v514
    %v519 = vtanh.pop %v517
    %v520 = vtanh.pop %v518
    %v521 = vsel %vm168, %v519, -inf
    %v522 = vrot.slane %v521, 4
    %v523 = vmax.f32 %v521, %v522
    %v524 = vrot.slane %v523, 2
    %v525 = vmax.f32 %v523, %v524
    %v526 = vrot.slane %v525, 1
    %v527 = vmax.f32 %v525, %v526
    %v528 = vsel %vm168, %v520, -inf
    %v529 = vrot.slane %v528, 4
    %v530 = vmax.f32 %v528, %v529
    %v531 = vrot.slane %v530, 2
    %v532 = vmax.f32 %v530, %v531
    %v533 = vrot.slane %v532, 1
    %v534 = vmax.f32 %v532, %v533
    %vm535 = vcmask 1040384
    %v536 = vsel %vm535, %v527, %v534
    %v537 = vld [vmem:[#allocation2 + $0x48] sm:$0xff]
    %v538 = vld [vmem:[#allocation2 + $0x50] sm:$0xff]
    %v539 = vld [vmem:[#allocation2 + $0x58] sm:$0xff]
    %v540 = vld [vmem:[#allocation2 + $0x60] sm:$0xff]
    %v541 = vlaneseq
    %v542 = vshrl.u32 %v541, 7
    %v543 = vsub.s32 3, %v542
    %v544 = vrot.slane %v28, %v543
    %v546 = vsel %vm168, %v536, 0
    %548 = vmatprep.subr.mxu0 0.0
    %549 = vmatpush1.msra.mxu0 %v537
    %550 = vmatprep.subr.mxu0 0.0
    %551 = vmatpush1.msra.mxu0 %v538
    %552 = vmatprep.subr.mxu0 0.0
    %553 = vmatpush1.msra.mxu0 %v539
    %554 = vmatprep.subr.mxu0 0.0
    %555 = vmatpush1.msra.mxu0 %v540
    %556 = vmatprep.subr.mxu0 0.0
    %557 = vmatpush1.msra.mxu0 0.0
    %558 = vmatprep.subr.mxu0 0.0
    %559 = vmatpush1.msra.mxu0 0.0
    %560 = vmatprep.subr.mxu0 0.0
    %561 = vmatpush1.msra.mxu0 0.0
    %562 = vmatprep.subr.mxu0 0.0
    %563 = vmatpush1.msra.mxu0 0.0
    %564 = vmatprep.subr.mxu0 0.0
    %565 = vmatpush1.msra.mxu0 0.0
    %566 = vmatprep.subr.mxu0 0.0
    %567 = vmatpush1.msra.mxu0 0.0
    %568 = vmatprep.subr.mxu0 0.0
    %569 = vmatpush1.msra.mxu0 0.0
    %570 = vmatprep.subr.mxu0 0.0
    %571 = vmatpush1.msra.mxu0 0.0
    %572 = vmatprep.subr.mxu0 0.0
    %573 = vmatpush1.msra.mxu0 0.0
    %574 = vmatprep.subr.mxu0 0.0
    %575 = vmatpush1.msra.mxu0 0.0
    %576 = vmatprep.subr.mxu0 0.0
    %577 = vmatpush1.msra.mxu0 0.0
    %578 = vmatprep.subr.mxu0 0.0
    %579 = vmatpush1.msra.mxu0 0.0
    %580 = vmatprep.subr.mxu0 0.0
    %581 = vmatpush1.msra.mxu0 0.0
    %582 = vmatprep.subr.mxu0 0.0
    %583 = vmatpush1.msra.mxu0 0.0
    %584 = vmatprep.subr.mxu0 0.0
    %585 = vmatpush1.msra.mxu0 0.0
    %586 = vmatprep.subr.mxu0 0.0
    %587 = vmatpush1.msra.mxu0 0.0
    %588 = vmatprep.subr.mxu0 0.0
    %589 = vmatpush1.msra.mxu0 0.0
    %590 = vmatprep.subr.mxu0 0.0
    %591 = vmatpush1.msra.mxu0 0.0
    %592 = vmatprep.subr.mxu0 0.0
    %593 = vmatpush1.msra.mxu0 0.0
    %594 = vmatprep.subr.mxu0 0.0
    %595 = vmatpush1.msra.mxu0 0.0
    %596 = vmatprep.subr.mxu0 0.0
    %597 = vmatpush1.msra.mxu0 0.0
    %598 = vmatprep.subr.mxu0 0.0
    %599 = vmatpush1.msra.mxu0 0.0
    %600 = vmatprep.subr.mxu0 0.0
    %601 = vmatpush1.msra.mxu0 0.0
    %602 = vmatprep.subr.mxu0 0.0
    %603 = vmatpush1.msra.mxu0 0.0
    %604 = vmatprep.subr.mxu0 0.0
    %605 = vmatpush1.msra.mxu0 0.0
    %606 = vmatprep.subr.mxu0 0.0
    %607 = vmatpush1.msra.mxu0 0.0
    %608 = vmatprep.subr.mxu0 0.0
    %609 = vmatpush1.msra.mxu0 0.0
    %610 = vmatprep.subr.mxu0 0.0
    %611 = vmatpush1.msra.mxu0 0.0
    %612 = vmatprep.mubr.f32.mxu0 0.0
    %613 = vmatmul.mubr.f32.gmra.mrb[0].mxu0 %v546
    %v614 = vpop.f32.mrb[0].mxu0
    %v615 = vadd.f32 %v544, %v614
    %v616 = vpop.f32.mrb[0].mxu0
    %617 = vdwg.mxu0
    %v618 = vtanh.pop %v615
    %v619 = vld [vmem:[#allocation2 + $0x68] sm:$0xff]
    %v620 = vld [vmem:[#allocation2 + $0x70] sm:$0xff]
    %v621 = vld [vmem:[#allocation2 + $0x78] sm:$0xff]
    %v622 = vld [vmem:[#allocation2 + $0x80] sm:$0xff]
    %v623 = vlaneseq
    %v624 = vshrl.u32 %v623, 7
    %v625 = vsub.s32 4, %v624
    %v626 = vrot.slane %v28, %v625
    %v628 = vsel %vm168, %v618, 0
    %630 = vmatprep.subr.mxu0 0.0
    %631 = vmatpush1.msra.mxu0 %v619
    %632 = vmatprep.subr.mxu0 0.0
    %633 = vmatpush1.msra.mxu0 %v620
    %634 = vmatprep.subr.mxu0 0.0
    %635 = vmatpush1.msra.mxu0 %v621
    %636 = vmatprep.subr.mxu0 0.0
    %637 = vmatpush1.msra.mxu0 %v622
    %638 = vmatprep.subr.mxu0 0.0
    %639 = vmatpush1.msra.mxu0 0.0
    %640 = vmatprep.subr.mxu0 0.0
    %641 = vmatpush1.msra.mxu0 0.0
    %642 = vmatprep.subr.mxu0 0.0
    %643 = vmatpush1.msra.mxu0 0.0
    %644 = vmatprep.subr.mxu0 0.0
    %645 = vmatpush1.msra.mxu0 0.0
    %646 = vmatprep.subr.mxu0 0.0
    %647 = vmatpush1.msra.mxu0 0.0
    %648 = vmatprep.subr.mxu0 0.0
    %649 = vmatpush1.msra.mxu0 0.0
    %650 = vmatprep.subr.mxu0 0.0
    %651 = vmatpush1.msra.mxu0 0.0
    %652 = vmatprep.subr.mxu0 0.0
    %653 = vmatpush1.msra.mxu0 0.0
    %654 = vmatprep.subr.mxu0 0.0
    %655 = vmatpush1.msra.mxu0 0.0
    %656 = vmatprep.subr.mxu0 0.0
    %657 = vmatpush1.msra.mxu0 0.0
    %658 = vmatprep.subr.mxu0 0.0
    %659 = vmatpush1.msra.mxu0 0.0
    %660 = vmatprep.subr.mxu0 0.0
    %661 = vmatpush1.msra.mxu0 0.0
    %662 = vmatprep.subr.mxu0 0.0
    %663 = vmatpush1.msra.mxu0 0.0
    %664 = vmatprep.subr.mxu0 0.0
    %665 = vmatpush1.msra.mxu0 0.0
    %666 = vmatprep.subr.mxu0 0.0
    %667 = vmatpush1.msra.mxu0 0.0
    %668 = vmatprep.subr.mxu0 0.0
    %669 = vmatpush1.msra.mxu0 0.0
    %670 = vmatprep.subr.mxu0 0.0
    %671 = vmatpush1.msra.mxu0 0.0
    %672 = vmatprep.subr.mxu0 0.0
    %673 = vmatpush1.msra.mxu0 0.0
    %674 = vmatprep.subr.mxu0 0.0
    %675 = vmatpush1.msra.mxu0 0.0
    %676 = vmatprep.subr.mxu0 0.0
    %677 = vmatpush1.msra.mxu0 0.0
    %678 = vmatprep.subr.mxu0 0.0
    %679 = vmatpush1.msra.mxu0 0.0
    %680 = vmatprep.subr.mxu0 0.0
    %681 = vmatpush1.msra.mxu0 0.0
    %682 = vmatprep.subr.mxu0 0.0
    %683 = vmatpush1.msra.mxu0 0.0
    %684 = vmatprep.subr.mxu0 0.0
    %685 = vmatpush1.msra.mxu0 0.0
    %686 = vmatprep.subr.mxu0 0.0
    %687 = vmatpush1.msra.mxu0 0.0
    %688 = vmatprep.subr.mxu0 0.0
    %689 = vmatpush1.msra.mxu0 0.0
    %690 = vmatprep.subr.mxu0 0.0
    %691 = vmatpush1.msra.mxu0 0.0
    %692 = vmatprep.subr.mxu0 0.0
    %693 = vmatpush1.msra.mxu0 0.0
    %694 = vmatprep.mubr.f32.mxu0 0.0
    %695 = vmatmul.mubr.f32.gmra.mrb[0].mxu0 %v628
    %v696 = vpop.f32.mrb[0].mxu0
    %v697 = vadd.f32 %v626, %v696
    %v698 = vpop.f32.mrb[0].mxu0
    %699 = vdwg.mxu0
    %700 = vst [vmem:[#allocation5] sm:$0x3] %v697
    // Predicated region
    $region14: #{tpu_custom_call.1} parent=1 // pred_check
      _
    $region15: #{tpu_custom_call.1} parent=1 // pred_check_branch
      %702 = sbr.rel (0) target = $region17
    $region16: #{tpu_custom_call.1} parent=1 // pred_region
      %s704 = ssub.s32 32, 32
      %705 = vsyncadd [#allocation4], %s704
      %s707 = sshll.u32 [#allocation5], 4
      %s708 = int_to_ptr.vmem [resolvable:$true] %s707
      %710 = dma.vmem_to_hbm [thread:$0]  %s708, 32, %s2, [#allocation4]
    $region17: #{tpu_custom_call.1} parent=1 // pred_fallthru
      _
    // Predicated region
    $region18: #{tpu_custom_call.1} parent=1 // pred_check
      _
    $region19: #{tpu_custom_call.1} parent=1 // pred_check_branch
      %712 = sbr.rel (0) target = $region21
    $region20: #{tpu_custom_call.1} parent=1 // pred_region
      %713 = dma.done [#allocation4], 32
    $region21: #{tpu_custom_call.1} parent=1 // pred_fallthru
      _
    %714 = vsyncpa [#allocation3], 1
    %715 = vsyncpa [#allocation4], 1

</llo_original>
